<compile_context>
chip_gen: v7x
topology: tpu7x:2x2x1
jax: 0.10.0
libtpu: 0.0.40
codegen_flags: <defaults>
</compile_context>

<pallas_src>
import math
from functools import partial

import jax
import jax.numpy as jnp
from jax.experimental import pallas as pl
from jax.experimental.pallas import tpu as pltpu


def _round_up(x, m):
    return ((x + m - 1) // m) * m


def _kde_tile_kernel(test_ref, train_ref, out_ref, acc_ref, *,
                     neg_inv_two_var, scale, n_valid, need_mask):
    """General (D > 1) tile: test (TM, D), train (TN, D), out (1, TM)."""
    j = pl.program_id(1)

    @pl.when(j == 0)
    def _init():
        acc_ref[...] = jnp.zeros_like(acc_ref)

    t = test_ref[...]                       # (TM, D) f32
    s = train_ref[...]                      # (TN, D) f32
    tn = s.shape[0]

    # Pairwise squared distances on the MXU:  ||t||^2 + ||s||^2 - 2 t.s
    # (inputs are mean-centered in the wrapper to limit cancellation).
    t_sq = jnp.sum(t * t, axis=-1, keepdims=True)                         # (TM, 1)
    ones_d = jnp.ones((1, s.shape[1]), jnp.float32)
    s_sq_row = jax.lax.dot_general(                                       # (1, TN)
        ones_d, s * s,
        dimension_numbers=(((1,), (1,)), ((), ())),
        preferred_element_type=jnp.float32)
    cross = jax.lax.dot_general(                                          # (TM, TN)
        t, s,
        dimension_numbers=(((1,), (1,)), ((), ())),
        preferred_element_type=jnp.float32)
    x_sq = jnp.maximum(t_sq + s_sq_row - 2.0 * cross, 0.0)

    e = jnp.exp(x_sq * neg_inv_two_var)                                   # EUP

    # Reduce over the train (lane) axis on the MXU; the weight row doubles as
    # the tail mask for padded train columns.
    if need_mask:
        col = jax.lax.broadcasted_iota(jnp.int32, (1, tn), 1) + j * tn
        w = (col < n_valid).astype(jnp.float32)                           # (1, TN)
    else:
        w = jnp.ones((1, tn), jnp.float32)
    acc_ref[...] += jax.lax.dot_general(                                  # (1, TM)
        w, e,
        dimension_numbers=(((1,), (1,)), ((), ())),
        preferred_element_type=jnp.float32)

    @pl.when(j == pl.num_programs(1) - 1)
    def _finalize():
        out_ref[...] = acc_ref[...] * scale   # scale = coef / N, applied once


def _kde_tile_kernel_1d(test_ref, train_ref, out_ref, acc_ref, *,
                        neg_inv_two_var, scale, n_valid, need_mask):
    """Scalar-data (D == 1) tile: test (TM, 1), train (1, TN), out (1, TM).
    Direct broadcast difference on the VPU (exact; no MXU distance trick)."""
    j = pl.program_id(1)

    @pl.when(j == 0)
    def _init():
        acc_ref[...] = jnp.zeros_like(acc_ref)

    t = test_ref[...]                        # (TM, 1)
    s = train_ref[...]                       # (1, TN)
    tn = s.shape[1]

    diff = t - s                             # (TM, TN) broadcast
    e = jnp.exp(diff * diff * neg_inv_two_var)

    if need_mask:
        col = jax.lax.broadcasted_iota(jnp.int32, (1, tn), 1) + j * tn
        w = (col < n_valid).astype(jnp.float32)
    else:
        w = jnp.ones((1, tn), jnp.float32)
    acc_ref[...] += jax.lax.dot_general(
        w, e,
        dimension_numbers=(((1,), (1,)), ((), ())),
        preferred_element_type=jnp.float32)

    @pl.when(j == pl.num_programs(1) - 1)
    def _finalize():
        out_ref[...] = acc_ref[...] * scale


def kde_forward(test_xs, train_xs, bandwidth=0.05, *, block_m=128, block_n=512):
    """p(x) for each x in test_xs given train_xs (Gaussian kernel, global bw).

    test_xs:  (M,) or (M, D...)    train_xs: (N,) or (N, D...)
    returns:  (M,) float32 densities
    """
    test_xs = jnp.asarray(test_xs, jnp.float32)
    train_xs = jnp.asarray(train_xs, jnp.float32)
    if test_xs.ndim == 1:
        test_xs = test_xs[:, None]
    if train_xs.ndim == 1:
        train_xs = train_xs[:, None]

    M = test_xs.shape[0]
    N = train_xs.shape[0]
    test_xs = test_xs.reshape(M, -1)    # flatten trailing feature dims
    train_xs = train_xs.reshape(N, -1)
    D = test_xs.shape[1]
    assert train_xs.shape[1] == D, "feature dims must match"

    # Hoisted scalar math (baked into the kernel as compile-time constants).
    bw = float(bandwidth)
    var = bw * bw
    neg_inv_two_var = -1.0 / (2.0 * var)
    coef = 1.0 / math.sqrt(2.0 * math.pi * var)
    scale = coef / float(N)

    # Tile sizes: TM is the lane axis of the (1, M) output -> multiple of 128;
    # TN multiple of 128 so the (TM, TN) intermediates fill vregs.
    tm = min(int(block_m), _round_up(M, 128))
    tn = min(int(block_n), _round_up(N, 128))
    m_pad = _round_up(M, tm)
    n_pad = _round_up(N, tn)
    need_mask = (n_pad != N)
    grid = (m_pad // tm, n_pad // tn)

    if D > 1:
        # Center the data so the ||t||^2 + ||s||^2 - 2 t.s decomposition does
        # not cancel catastrophically; differences (and distances) unchanged.
        center = jnp.mean(train_xs, axis=0, keepdims=True)
        test_xs = test_xs - center
        train_xs = train_xs - center

    test_p = jnp.zeros((m_pad, D), jnp.float32).at[:M].set(test_xs)

    if D == 1:
        train_p = jnp.zeros((1, n_pad), jnp.float32).at[0, :N].set(train_xs[:, 0])
        kern = partial(_kde_tile_kernel_1d,
                       neg_inv_two_var=neg_inv_two_var, scale=scale,
                       n_valid=N, need_mask=need_mask)
        test_spec = pl.BlockSpec((tm, 1), lambda i, j: (i, 0))
        train_spec = pl.BlockSpec((1, tn), lambda i, j: (0, j))
    else:
        train_p = jnp.zeros((n_pad, D), jnp.float32).at[:N].set(train_xs)
        kern = partial(_kde_tile_kernel,
                       neg_inv_two_var=neg_inv_two_var, scale=scale,
                       n_valid=N, need_mask=need_mask)
        test_spec = pl.BlockSpec((tm, D), lambda i, j: (i, 0))
        train_spec = pl.BlockSpec((tn, D), lambda i, j: (j, 0))

    out = pl.pallas_call(
        kern,
        out_shape=jax.ShapeDtypeStruct((1, m_pad), jnp.float32),
        grid=grid,
        in_specs=[test_spec, train_spec],
        out_specs=pl.BlockSpec((1, tm), lambda i, j: (0, i)),   # lane-dense output
        scratch_shapes=[pltpu.VMEM((1, tm), jnp.float32)],       # accumulator
        compiler_params=pltpu.CompilerParams(
            dimension_semantics=("parallel", "arbitrary"),
            vmem_limit_bytes=64 * 1024 * 1024),
    )(test_p, train_p)

    return out[0, :M]


def _kde_reference(test_xs, train_xs, bandwidth=0.05):
    """Pure-JAX reference mirroring the PyTorch Gaussian Kernel.forward."""
    test_xs = jnp.asarray(test_xs, jnp.float32)
    train_xs = jnp.asarray(train_xs, jnp.float32)
    if test_xs.ndim == 1:
        diffs = test_xs[:, None] - train_xs[None, :]
        x_sq = diffs ** 2
    else:
        diffs = test_xs[:, None, :] - train_xs[None, :, :]
        x_sq = jnp.sum(diffs.reshape(diffs.shape[0], diffs.shape[1], -1) ** 2, axis=-1)
    var = bandwidth ** 2
    e = jnp.exp(-x_sq / (2.0 * var))
    coef = 1.0 / jnp.sqrt(2.0 * jnp.pi * var)
    return (coef * e).mean(axis=1)


# TODO(synk): Kernel.sample() and the adaptive local_bw_scalings path are not
# part of the forward pass exercised here and are not implemented.

if __name__ == "__main__":
    key = jax.random.PRNGKey(0)
    k_train, k_noise, k_1d = jax.random.split(key, 3)

    # Multivariate case: KDE "training" data + query points near them so the
    # Gaussian kernel is not uniformly underflowed.
    N, M, D = 16, 8, 8
    train_Xs = jax.random.normal(k_train, (N, D), dtype=jnp.float32)
    x = train_Xs[:M] + 0.02 * jax.random.normal(k_noise, (M, D), dtype=jnp.float32)
    bandwidth = 0.2

    out = kde_forward(x, train_Xs, bandwidth)
    jax.block_until_ready(out)
    ref = _kde_reference(x, train_Xs, bandwidth)
    assert out.shape == (M,)
    # ||a||^2+||b||^2-2ab path loses a few digits vs the direct (a-b)^2 reference.
    assert jnp.allclose(out, ref, rtol=5e-3, atol=1e-6), (out, ref)

    # Scalar-data (D == 1) path — direct VPU difference, near-exact.
    train_1d = jax.random.normal(k_1d, (N,), dtype=jnp.float32)
    x_1d = train_1d[:M] + 0.01
    out_1d = kde_forward(x_1d, train_1d, 0.05)
    jax.block_until_ready(out_1d)
    ref_1d = _kde_reference(x_1d, train_1d, 0.05)
    assert out_1d.shape == (M,)
    assert jnp.allclose(out_1d, ref_1d, rtol=1e-4, atol=1e-7), (out_1d, ref_1d)

    print("KERNEL_OK")
</pallas_src>

<mosaic_0001>
module attributes {stable_mosaic.version = 11 : i64} {
  func.func @_kde_tile_kernel(%arg0: i32, %arg1: i32, %arg2: memref<128x8xf32, #tpu.memory_space<vmem>>, %arg3: memref<128x8xf32, #tpu.memory_space<vmem>>, %arg4: memref<1x128xf32, #tpu.memory_space<vmem>>, %arg5: memref<1x128xf32, #tpu.memory_space<vmem>>) attributes {dimension_semantics = [#tpu.dimension_semantics<parallel>, #tpu.dimension_semantics<arbitrary>], iteration_bounds = array<i64: 1, 1>, scalar_prefetch = 0 : i64, scratch_operands = 1 : i64, tpu.core_type = #tpu.core_type<tc>, window_params = [{transform_indices = @transform_0, window_bounds = array<i64: 128, 8>}, {transform_indices = @transform_1, window_bounds = array<i64: 128, 8>}, {transform_indices = @transform_2, window_bounds = array<i64: 1, 128>}]} {
    %c0_i32 = arith.constant 0 : i32
    %0 = arith.cmpi eq, %arg1, %c0_i32 : i32
    %1 = arith.extui %0 : i1 to i32
    %c0_i32_0 = arith.constant 0 : i32
    %2 = arith.cmpi ne, %1, %c0_i32_0 : i32
    scf.if %2 {
      %cst_17 = arith.constant 0.000000e+00 : f32
      %38 = vector.broadcast %cst_17 : f32 to vector<1x128xf32>
      %c0_18 = arith.constant 0 : index
      %c0_19 = arith.constant 0 : index
      %39 = vector.load %arg5[%c0_18, %c0_19] : memref<1x128xf32, #tpu.memory_space<vmem>>, vector<1x128xf32>
      tpu.vector_store %arg5[%c0_18, %c0_19], %38 {strides = array<i32>} : memref<1x128xf32, #tpu.memory_space<vmem>>, vector<1x128xf32>,
    } else {
    }
    %c0 = arith.constant 0 : index
    %c0_1 = arith.constant 0 : index
    %3 = vector.load %arg2[%c0, %c0_1] : memref<128x8xf32, #tpu.memory_space<vmem>>, vector<128x8xf32>
    %c0_2 = arith.constant 0 : index
    %c0_3 = arith.constant 0 : index
    %4 = vector.load %arg3[%c0_2, %c0_3] : memref<128x8xf32, #tpu.memory_space<vmem>>, vector<128x8xf32>
    %5 = arith.mulf %3, %3 : vector<128x8xf32>
    %cst = arith.constant dense<0.000000e+00> : vector<128xf32>
    %6 = vector.multi_reduction <add>, %5, %cst [1] : vector<128x8xf32> to vector<128xf32>
    %7 = vector.shape_cast %6 : vector<128xf32> to vector<128x1xf32>
    %cst_4 = arith.constant 1.000000e+00 : f32
    %8 = vector.broadcast %cst_4 : f32 to vector<1x8xf32>
    %9 = arith.mulf %4, %4 : vector<128x8xf32>
    %cst_5 = arith.constant dense<0.000000e+00> : vector<1x128xf32>
    %10 = tpu.matmul %8, %9, %cst_5 {dimension_numbers = #tpu.dot_dimension_numbers<[1], [1], [0], [0], [0, 0, 1, 0], [], []>} : vector<1x8xf32>, vector<128x8xf32>, vector<1x128xf32> -> vector<1x128xf32>
    %cst_6 = arith.constant dense<0.000000e+00> : vector<128x128xf32>
    %11 = tpu.matmul %3, %4, %cst_6 {dimension_numbers = #tpu.dot_dimension_numbers<[1], [1], [0], [0], [0, 0, 1, 0], [], []>} : vector<128x8xf32>, vector<128x8xf32>, vector<128x128xf32> -> vector<128x128xf32>
    %12 = vector.broadcast %7 : vector<128x1xf32> to vector<128x128xf32>
    %13 = vector.broadcast %10 : vector<1x128xf32> to vector<128x128xf32>
    %14 = arith.addf %12, %13 : vector<128x128xf32>
    %cst_7 = arith.constant 2.000000e+00 : f32
    %15 = vector.broadcast %cst_7 : f32 to vector<128x128xf32>
    %16 = arith.mulf %15, %11 : vector<128x128xf32>
    %17 = arith.subf %14, %16 : vector<128x128xf32>
    %cst_8 = arith.constant 0.000000e+00 : f32
    %18 = vector.broadcast %cst_8 : f32 to vector<128x128xf32>
    %19 = arith.maximumf %17, %18 : vector<128x128xf32>
    %cst_9 = arith.constant -1.250000e+01 : f32
    %20 = vector.broadcast %cst_9 : f32 to vector<128x128xf32>
    %21 = arith.mulf %19, %20 : vector<128x128xf32>
    %22 = math.exp %21 : vector<128x128xf32>
    %23 = tpu.iota {dimensions = array<i32: 1>} : vector<1x128xi32>
    %c128_i32 = arith.constant 128 : i32
    %24 = arith.muli %arg1, %c128_i32 : i32
    %25 = vector.broadcast %24 : i32 to vector<1x128xi32>
    %26 = arith.addi %23, %25 : vector<1x128xi32>
    %c16_i32 = arith.constant 16 : i32
    %27 = vector.broadcast %c16_i32 : i32 to vector<1x128xi32>
    %28 = arith.cmpi slt, %26, %27 : vector<1x128xi32>
    %29 = arith.extui %28 : vector<1x128xi1> to vector<1x128xi32>
    %30 = arith.sitofp %29 : vector<1x128xi32> to vector<1x128xf32>
    %c0_10 = arith.constant 0 : index
    %c0_11 = arith.constant 0 : index
    %31 = vector.load %arg5[%c0_10, %c0_11] : memref<1x128xf32, #tpu.memory_space<vmem>>, vector<1x128xf32>
    %cst_12 = arith.constant dense<0.000000e+00> : vector<1x128xf32>
    %32 = tpu.matmul %30, %22, %cst_12 {dimension_numbers = #tpu.dot_dimension_numbers<[1], [1], [0], [0], [0, 0, 1, 0], [], []>} : vector<1x128xf32>, vector<128x128xf32>, vector<1x128xf32> -> vector<1x128xf32>
    %33 = arith.addf %31, %32 : vector<1x128xf32>
    %c0_13 = arith.constant 0 : index
    %c0_14 = arith.constant 0 : index
    %34 = vector.load %arg5[%c0_13, %c0_14] : memref<1x128xf32, #tpu.memory_space<vmem>>, vector<1x128xf32>
    tpu.vector_store %arg5[%c0_13, %c0_14], %33 {strides = array<i32>} : memref<1x128xf32, #tpu.memory_space<vmem>>, vector<1x128xf32>,
    %c0_i32_15 = arith.constant 0 : i32
    %35 = arith.cmpi eq, %arg1, %c0_i32_15 : i32
    %36 = arith.extui %35 : i1 to i32
    %c0_i32_16 = arith.constant 0 : i32
    %37 = arith.cmpi ne, %36, %c0_i32_16 : i32
    scf.if %37 {
      %c0_17 = arith.constant 0 : index
      %c0_18 = arith.constant 0 : index
      %38 = vector.load %arg5[%c0_17, %c0_18] : memref<1x128xf32, #tpu.memory_space<vmem>>, vector<1x128xf32>
      %cst_19 = arith.constant 0.124669462 : f32
      %39 = vector.broadcast %cst_19 : f32 to vector<1x128xf32>
      %40 = arith.mulf %38, %39 : vector<1x128xf32>
      %c0_20 = arith.constant 0 : index
      %c0_21 = arith.constant 0 : index
      %41 = vector.load %arg4[%c0_20, %c0_21] : memref<1x128xf32, #tpu.memory_space<vmem>>, vector<1x128xf32>
      tpu.vector_store %arg4[%c0_20, %c0_21], %40 {strides = array<i32>} : memref<1x128xf32, #tpu.memory_space<vmem>>, vector<1x128xf32>,
    } else {
    }
    return
  }
  func.func @transform_0(%arg0: i32, %arg1: i32) -> (i32, i32) {
    %c0_i32 = arith.constant 0 : i32
    %c0_i32_0 = arith.constant 0 : i32
    return %arg0, %c0_i32 : i32, i32
  }
  func.func @transform_1(%arg0: i32, %arg1: i32) -> (i32, i32) {
    %c0_i32 = arith.constant 0 : i32
    %c0_i32_0 = arith.constant 0 : i32
    return %arg1, %c0_i32 : i32, i32
  }
  func.func @transform_2(%arg0: i32, %arg1: i32) -> (i32, i32) {
    %c0_i32 = arith.constant 0 : i32
    %c0_i32_0 = arith.constant 0 : i32
    return %c0_i32, %arg0 : i32, i32
  }
}

</mosaic_0001>

<llo_original>
// kernel: tpu_custom_call.1
$region0: #{tpu_custom_call.1}
  #allocation0 [shape = 'u32[]', space=smem, size = 0x4, offset = 0x4, fixed_abs, tag = 'smem constant byte address 0x4 - core index']
  #allocation1 [shape = 'u32[144,128]{1,0:T(1,128)}', space=vmem, size = 0x12000, scoped, tag = 'internal scratch']
  #allocation2 [shape = 'f32[1,128]{1,0:T(1,128)}', space=vmem, size = 0x200, scoped, tag = 'scratch operand']
  %s0 = inlined_call_operand.hbm [shape: f32[128,8], index: 0, kind: input, shape index: {}]
  %s1 = inlined_call_operand.hbm [shape: f32[128,8], index: 1, kind: input, shape index: {}]
  %s2 = inlined_call_operand.hbm [shape: f32[1,128], index: 2, kind: output, shape index: {}]
  %s3 = sld [smem:[#allocation0]]
  $region34: #{tpu_custom_call.1} parent=0
    _
  %s5 = ssub.s32 1, %s3
  %s6 = scalar_select 0, %s5, %s3
  $region1: #{tpu_custom_call.1} parent=0
    #allocation3 [shape = 'u8[65536]{0}', space=vmem, size = 0x10000, scoped, tag = 'input window, operand 0, single buffered']
    #allocation4 [shape = 's32[1]{0}', space=sflag, size = 0x4, scoped, tag = 'scoped memory for tpu_custom_call.1']
    #allocation5 [shape = 's32[1]{0}', space=sflag, size = 0x4, scoped, tag = 'scoped memory for tpu_custom_call.1']
    #allocation6 [shape = 'u8[65536]{0}', space=vmem, size = 0x10000, scoped, tag = 'input window, operand 1, single buffered']
    #allocation7 [shape = 's32[1]{0}', space=sflag, size = 0x4, scoped, tag = 'scoped memory for tpu_custom_call.1']
    #allocation8 [shape = 'u8[512]{0}', space=vmem, size = 0x400, scoped, tag = 'output window, operand 0, single buffered']
    %7 = vsyncpa [#allocation4], 0
    %8 = vsyncpa [#allocation7], 0
    %9 = vsyncpa [#allocation5], 0
    // Predicated region
    $region2: #{tpu_custom_call.1} parent=1 // pred_check
      _
    $region3: #{tpu_custom_call.1} parent=1 // pred_check_branch
      %11 = sbr.rel (0) target = $region5
    $region4: #{tpu_custom_call.1} parent=1 // pred_region
      %s13 = ssub.s32 2048, 2048
      %14 = vsyncadd [#allocation4], %s13
      %s15 = sshll.u32 [#allocation3], 4
      %s16 = int_to_ptr.vmem [resolvable:$true] %s15
      %21 = dma.hbm_to_vmem [thread:$0]  %s0, 2048, %s16, [#allocation4], 128, 128, 8
    $region5: #{tpu_custom_call.1} parent=1 // pred_fallthru
      _
    // Predicated region
    $region6: #{tpu_custom_call.1} parent=1 // pred_check
      _
    $region7: #{tpu_custom_call.1} parent=1 // pred_check_branch
      %23 = sbr.rel (0) target = $region9
    $region8: #{tpu_custom_call.1} parent=1 // pred_region
      %s25 = ssub.s32 2048, 2048
      %26 = vsyncadd [#allocation7], %s25
      %s27 = sshll.u32 [#allocation6], 4
      %s28 = int_to_ptr.vmem [resolvable:$true] %s27
      %33 = dma.hbm_to_vmem [thread:$0]  %s1, 2048, %s28, [#allocation7], 128, 128, 8
    $region9: #{tpu_custom_call.1} parent=1 // pred_fallthru
      _
    // Predicated region
    $region10: #{tpu_custom_call.1} parent=1 // pred_check
      _
    $region11: #{tpu_custom_call.1} parent=1 // pred_check_branch
      %35 = sbr.rel (0) target = $region13
    $region12: #{tpu_custom_call.1} parent=1 // pred_region
      %36 = dma.done [#allocation4], 2048
    $region13: #{tpu_custom_call.1} parent=1 // pred_fallthru
      _
    // Predicated region
    $region14: #{tpu_custom_call.1} parent=1 // pred_check
      _
    $region15: #{tpu_custom_call.1} parent=1 // pred_check_branch
      %38 = sbr.rel (0) target = $region17
    $region16: #{tpu_custom_call.1} parent=1 // pred_region
      %39 = dma.done [#allocation7], 2048
    $region17: #{tpu_custom_call.1} parent=1 // pred_fallthru
      _
    %p40 = scmp.eq.s32.totalorder 0, 0
    // Predicated region
    $region18: #{tpu_custom_call.1} parent=1 // pred_check
      %p41 = pneg %p40
    $region19: #{tpu_custom_call.1} parent=1 // pred_check_branch
      %43 = sbr.rel (%p41) target = $region21
    $region20: #{tpu_custom_call.1} parent=1 // pred_region
      %44 = vst [vmem:[#allocation2] sm:$0x1] 0.0
    $region21: #{tpu_custom_call.1} parent=1 // pred_fallthru
      _
    %v45 = vld [vmem:[#allocation3] sm:$0xff]
    %v46 = vld [vmem:[#allocation3 + $0x8] sm:$0xff]
    %v47 = vld [vmem:[#allocation3 + $0x10] sm:$0xff]
    %v48 = vld [vmem:[#allocation3 + $0x18] sm:$0xff]
    %v49 = vld [vmem:[#allocation3 + $0x20] sm:$0xff]
    %v50 = vld [vmem:[#allocation3 + $0x28] sm:$0xff]
    %v51 = vld [vmem:[#allocation3 + $0x30] sm:$0xff]
    %v52 = vld [vmem:[#allocation3 + $0x38] sm:$0xff]
    %v53 = vld [vmem:[#allocation3 + $0x40] sm:$0xff]
    %v54 = vld [vmem:[#allocation3 + $0x48] sm:$0xff]
    %v55 = vld [vmem:[#allocation3 + $0x50] sm:$0xff]
    %v56 = vld [vmem:[#allocation3 + $0x58] sm:$0xff]
    %v57 = vld [vmem:[#allocation3 + $0x60] sm:$0xff]
    %v58 = vld [vmem:[#allocation3 + $0x68] sm:$0xff]
    %v59 = vld [vmem:[#allocation3 + $0x70] sm:$0xff]
    %v60 = vld [vmem:[#allocation3 + $0x78] sm:$0xff]
    %v61 = vld [vmem:[#allocation6] sm:$0xff]
    %v62 = vld [vmem:[#allocation6 + $0x8] sm:$0xff]
    %v63 = vld [vmem:[#allocation6 + $0x10] sm:$0xff]
    %v64 = vld [vmem:[#allocation6 + $0x18] sm:$0xff]
    %v65 = vld [vmem:[#allocation6 + $0x20] sm:$0xff]
    %v66 = vld [vmem:[#allocation6 + $0x28] sm:$0xff]
    %v67 = vld [vmem:[#allocation6 + $0x30] sm:$0xff]
    %v68 = vld [vmem:[#allocation6 + $0x38] sm:$0xff]
    %v69 = vld [vmem:[#allocation6 + $0x40] sm:$0xff]
    %v70 = vld [vmem:[#allocation6 + $0x48] sm:$0xff]
    %v71 = vld [vmem:[#allocation6 + $0x50] sm:$0xff]
    %v72 = vld [vmem:[#allocation6 + $0x58] sm:$0xff]
    %v73 = vld [vmem:[#allocation6 + $0x60] sm:$0xff]
    %v74 = vld [vmem:[#allocation6 + $0x68] sm:$0xff]
    %v75 = vld [vmem:[#allocation6 + $0x70] sm:$0xff]
    %v76 = vld [vmem:[#allocation6 + $0x78] sm:$0xff]
    %v77 = vmul.f32 %v45, %v45
    %v78 = vmul.f32 %v46, %v46
    %v79 = vmul.f32 %v47, %v47
    %v80 = vmul.f32 %v48, %v48
    %v81 = vmul.f32 %v49, %v49
    %v82 = vmul.f32 %v50, %v50
    %v83 = vmul.f32 %v51, %v51
    %v84 = vmul.f32 %v52, %v52
    %v85 = vmul.f32 %v53, %v53
    %v86 = vmul.f32 %v54, %v54
    %v87 = vmul.f32 %v55, %v55
    %v88 = vmul.f32 %v56, %v56
    %v89 = vmul.f32 %v57, %v57
    %v90 = vmul.f32 %v58, %v58
    %v91 = vmul.f32 %v59, %v59
    %v92 = vmul.f32 %v60, %v60
    %vm93 = vcmask 64512
    %v94 = vsel %vm93, %v77, 0.0
    %95 = vadd.xlane.f32.xlu0 %v94
    %v96 = vpop.xlane.xlu0 %95
    %v97 = vsel %vm93, %v78, 0.0
    %98 = vadd.xlane.f32.xlu0 %v97
    %v99 = vpop.xlane.xlu0 %98
    %v100 = vsel %vm93, %v79, 0.0
    %101 = vadd.xlane.f32.xlu0 %v100
    %v102 = vpop.xlane.xlu0 %101
    %v103 = vsel %vm93, %v80, 0.0
    %104 = vadd.xlane.f32.xlu0 %v103
    %v105 = vpop.xlane.xlu0 %104
    %v106 = vsel %vm93, %v81, 0.0
    %107 = vadd.xlane.f32.xlu0 %v106
    %v108 = vpop.xlane.xlu0 %107
    %v109 = vsel %vm93, %v82, 0.0
    %110 = vadd.xlane.f32.xlu0 %v109
    %v111 = vpop.xlane.xlu0 %110
    %v112 = vsel %vm93, %v83, 0.0
    %113 = vadd.xlane.f32.xlu0 %v112
    %v114 = vpop.xlane.xlu0 %113
    %v115 = vsel %vm93, %v84, 0.0
    %116 = vadd.xlane.f32.xlu0 %v115
    %v117 = vpop.xlane.xlu0 %116
    %v118 = vsel %vm93, %v85, 0.0
    %119 = vadd.xlane.f32.xlu0 %v118
    %v120 = vpop.xlane.xlu0 %119
    %v121 = vsel %vm93, %v86, 0.0
    %122 = vadd.xlane.f32.xlu0 %v121
    %v123 = vpop.xlane.xlu0 %122
    %v124 = vsel %vm93, %v87, 0.0
    %125 = vadd.xlane.f32.xlu0 %v124
    %v126 = vpop.xlane.xlu0 %125
    %v127 = vsel %vm93, %v88, 0.0
    %128 = vadd.xlane.f32.xlu0 %v127
    %v129 = vpop.xlane.xlu0 %128
    %v130 = vsel %vm93, %v89, 0.0
    %131 = vadd.xlane.f32.xlu0 %v130
    %v132 = vpop.xlane.xlu0 %131
    %v133 = vsel %vm93, %v90, 0.0
    %134 = vadd.xlane.f32.xlu0 %v133
    %v135 = vpop.xlane.xlu0 %134
    %v136 = vsel %vm93, %v91, 0.0
    %137 = vadd.xlane.f32.xlu0 %v136
    %v138 = vpop.xlane.xlu0 %137
    %v139 = vsel %vm93, %v92, 0.0
    %140 = vadd.xlane.f32.xlu0 %v139
    %v141 = vpop.xlane.xlu0 %140
    %v142 = vmul.f32 %v61, %v61
    %v143 = vmul.f32 %v62, %v62
    %v144 = vmul.f32 %v63, %v63
    %v145 = vmul.f32 %v64, %v64
    %v146 = vmul.f32 %v65, %v65
    %v147 = vmul.f32 %v66, %v66
    %v148 = vmul.f32 %v67, %v67
    %v149 = vmul.f32 %v68, %v68
    %v150 = vmul.f32 %v69, %v69
    %v151 = vmul.f32 %v70, %v70
    %v152 = vmul.f32 %v71, %v71
    %v153 = vmul.f32 %v72, %v72
    %v154 = vmul.f32 %v73, %v73
    %v155 = vmul.f32 %v74, %v74
    %v156 = vmul.f32 %v75, %v75
    %v157 = vmul.f32 %v76, %v76
    %v159 = vsel %vm93, 1.0, 0
    %v162 = vsel %vm93, %v142, 0
    %v165 = vsel %vm93, %v143, 0
    %v168 = vsel %vm93, %v144, 0
    %v171 = vsel %vm93, %v145, 0
    %v174 = vsel %vm93, %v146, 0
    %v177 = vsel %vm93, %v147, 0
    %v180 = vsel %vm93, %v148, 0
    %v183 = vsel %vm93, %v149, 0
    %v186 = vsel %vm93, %v150, 0
    %v189 = vsel %vm93, %v151, 0
    %v192 = vsel %vm93, %v152, 0
    %v195 = vsel %vm93, %v153, 0
    %v198 = vsel %vm93, %v154, 0
    %v201 = vsel %vm93, %v155, 0
    %v204 = vsel %vm93, %v156, 0
    %v207 = vsel %vm93, %v157, 0
    %209 = vmatprep.subr.mxu0 0.0
    %210 = vmatpush1.xpose.msra.mxu0 %v162
    %211 = vmatprep.subr.mxu0 0.0
    %212 = vmatpush1.xpose.msra.mxu0 %v165
    %213 = vmatprep.subr.mxu0 0.0
    %214 = vmatpush1.xpose.msra.mxu0 %v168
    %215 = vmatprep.subr.mxu0 0.0
    %216 = vmatpush1.xpose.msra.mxu0 %v171
    %217 = vmatprep.subr.mxu0 0.0
    %218 = vmatpush1.xpose.msra.mxu0 %v174
    %219 = vmatprep.subr.mxu0 0.0
    %220 = vmatpush1.xpose.msra.mxu0 %v177
    %221 = vmatprep.subr.mxu0 0.0
    %222 = vmatpush1.xpose.msra.mxu0 %v180
    %223 = vmatprep.subr.mxu0 0.0
    %224 = vmatpush1.xpose.msra.mxu0 %v183
    %225 = vmatprep.subr.mxu0 0.0
    %226 = vmatpush1.xpose.msra.mxu0 %v186
    %227 = vmatprep.subr.mxu0 0.0
    %228 = vmatpush1.xpose.msra.mxu0 %v189
    %229 = vmatprep.subr.mxu0 0.0
    %230 = vmatpush1.xpose.msra.mxu0 %v192
    %231 = vmatprep.subr.mxu0 0.0
    %232 = vmatpush1.xpose.msra.mxu0 %v195
    %233 = vmatprep.subr.mxu0 0.0
    %234 = vmatpush1.xpose.msra.mxu0 %v198
    %235 = vmatprep.subr.mxu0 0.0
    %236 = vmatpush1.xpose.msra.mxu0 %v201
    %237 = vmatprep.subr.mxu0 0.0
    %238 = vmatpush1.xpose.msra.mxu0 %v204
    %239 = vmatprep.subr.mxu0 0.0
    %240 = vmatpush1.xpose.msra.mxu0 %v207
    %241 = vmatprep.subr.mxu0 0.0
    %242 = vmatpush1.xpose.msra.mxu0 0.0
    %243 = vmatprep.subr.mxu0 0.0
    %244 = vmatpush1.xpose.msra.mxu0 0.0
    %245 = vmatprep.subr.mxu0 0.0
    %246 = vmatpush1.xpose.msra.mxu0 0.0
    %247 = vmatprep.subr.mxu0 0.0
    %248 = vmatpush1.xpose.msra.mxu0 0.0
    %249 = vmatprep.subr.mxu0 0.0
    %250 = vmatpush1.xpose.msra.mxu0 0.0
    %251 = vmatprep.subr.mxu0 0.0
    %252 = vmatpush1.xpose.msra.mxu0 0.0
    %253 = vmatprep.subr.mxu0 0.0
    %254 = vmatpush1.xpose.msra.mxu0 0.0
    %255 = vmatprep.subr.mxu0 0.0
    %256 = vmatpush1.xpose.msra.mxu0 0.0
    %257 = vmatprep.subr.mxu0 0.0
    %258 = vmatpush1.xpose.msra.mxu0 0.0
    %259 = vmatprep.subr.mxu0 0.0
    %260 = vmatpush1.xpose.msra.mxu0 0.0
    %261 = vmatprep.subr.mxu0 0.0
    %262 = vmatpush1.xpose.msra.mxu0 0.0
    %263 = vmatprep.subr.mxu0 0.0
    %264 = vmatpush1.xpose.msra.mxu0 0.0
    %265 = vmatprep.subr.mxu0 0.0
    %266 = vmatpush1.xpose.msra.mxu0 0.0
    %267 = vmatprep.subr.mxu0 0.0
    %268 = vmatpush1.xpose.msra.mxu0 0.0
    %269 = vmatprep.subr.mxu0 0.0
    %270 = vmatpush1.xpose.msra.mxu0 0.0
    %271 = vmatprep.subr.mxu0 0.0
    %272 = vmatpush1.xpose.msra.mxu0 0.0
    %273 = vmatprep.mubr.f32.mxu0 0.0
    %274 = vmatmul.mubr.f32.gmra.mrb[0].mxu0 %v159
    %v275 = vpop.f32.mrb[0].mxu0
    %v276 = vadd.f32 0.0, %v275
    %v277 = vpop.f32.mrb[0].mxu0
    %278 = vdwg.mxu0
    %v280 = vsel %vm93, %v45, 0
    %v283 = vsel %vm93, %v46, 0
    %v286 = vsel %vm93, %v47, 0
    %v289 = vsel %vm93, %v48, 0
    %v292 = vsel %vm93, %v49, 0
    %v295 = vsel %vm93, %v50, 0
    %v298 = vsel %vm93, %v51, 0
    %v301 = vsel %vm93, %v52, 0
    %v304 = vsel %vm93, %v53, 0
    %v307 = vsel %vm93, %v54, 0
    %v310 = vsel %vm93, %v55, 0
    %v313 = vsel %vm93, %v56, 0
    %v316 = vsel %vm93, %v57, 0
    %v319 = vsel %vm93, %v58, 0
    %v322 = vsel %vm93, %v59, 0
    %v325 = vsel %vm93, %v60, 0
    %v328 = vsel %vm93, %v61, 0
    %v331 = vsel %vm93, %v62, 0
    %v334 = vsel %vm93, %v63, 0
    %v337 = vsel %vm93, %v64, 0
    %v340 = vsel %vm93, %v65, 0
    %v343 = vsel %vm93, %v66, 0
    %v346 = vsel %vm93, %v67, 0
    %v349 = vsel %vm93, %v68, 0
    %v352 = vsel %vm93, %v69, 0
    %v355 = vsel %vm93, %v70, 0
    %v358 = vsel %vm93, %v71, 0
    %v361 = vsel %vm93, %v72, 0
    %v364 = vsel %vm93, %v73, 0
    %v367 = vsel %vm93, %v74, 0
    %v370 = vsel %vm93, %v75, 0
    %v373 = vsel %vm93, %v76, 0
    %375 = vmatprep.subr.mxu0 0.0
    %376 = vmatpush1.xpose.msra.mxu0 %v328
    %377 = vmatprep.subr.mxu0 0.0
    %378 = vmatpush1.xpose.msra.mxu0 %v331
    %379 = vmatprep.subr.mxu0 0.0
    %380 = vmatpush1.xpose.msra.mxu0 %v334
    %381 = vmatprep.subr.mxu0 0.0
    %382 = vmatpush1.xpose.msra.mxu0 %v337
    %383 = vmatprep.subr.mxu0 0.0
    %384 = vmatpush1.xpose.msra.mxu0 %v340
    %385 = vmatprep.subr.mxu0 0.0
    %386 = vmatpush1.xpose.msra.mxu0 %v343
    %387 = vmatprep.subr.mxu0 0.0
    %388 = vmatpush1.xpose.msra.mxu0 %v346
    %389 = vmatprep.subr.mxu0 0.0
    %390 = vmatpush1.xpose.msra.mxu0 %v349
    %391 = vmatprep.subr.mxu0 0.0
    %392 = vmatpush1.xpose.msra.mxu0 %v352
    %393 = vmatprep.subr.mxu0 0.0
    %394 = vmatpush1.xpose.msra.mxu0 %v355
    %395 = vmatprep.subr.mxu0 0.0
    %396 = vmatpush1.xpose.msra.mxu0 %v358
    %397 = vmatprep.subr.mxu0 0.0
    %398 = vmatpush1.xpose.msra.mxu0 %v361
    %399 = vmatprep.subr.mxu0 0.0
    %400 = vmatpush1.xpose.msra.mxu0 %v364
    %401 = vmatprep.subr.mxu0 0.0
    %402 = vmatpush1.xpose.msra.mxu0 %v367
    %403 = vmatprep.subr.mxu0 0.0
    %404 = vmatpush1.xpose.msra.mxu0 %v370
    %405 = vmatprep.subr.mxu0 0.0
    %406 = vmatpush1.xpose.msra.mxu0 %v373
    %407 = vmatprep.subr.mxu0 0.0
    %408 = vmatpush1.xpose.msra.mxu0 0.0
    %409 = vmatprep.subr.mxu0 0.0
    %410 = vmatpush1.xpose.msra.mxu0 0.0
    %411 = vmatprep.subr.mxu0 0.0
    %412 = vmatpush1.xpose.msra.mxu0 0.0
    %413 = vmatprep.subr.mxu0 0.0
    %414 = vmatpush1.xpose.msra.mxu0 0.0
    %415 = vmatprep.subr.mxu0 0.0
    %416 = vmatpush1.xpose.msra.mxu0 0.0
    %417 = vmatprep.subr.mxu0 0.0
    %418 = vmatpush1.xpose.msra.mxu0 0.0
    %419 = vmatprep.subr.mxu0 0.0
    %420 = vmatpush1.xpose.msra.mxu0 0.0
    %421 = vmatprep.subr.mxu0 0.0
    %422 = vmatpush1.xpose.msra.mxu0 0.0
    %423 = vmatprep.subr.mxu0 0.0
    %424 = vmatpush1.xpose.msra.mxu0 0.0
    %425 = vmatprep.subr.mxu0 0.0
    %426 = vmatpush1.xpose.msra.mxu0 0.0
    %427 = vmatprep.subr.mxu0 0.0
    %428 = vmatpush1.xpose.msra.mxu0 0.0
    %429 = vmatprep.subr.mxu0 0.0
    %430 = vmatpush1.xpose.msra.mxu0 0.0
    %431 = vmatprep.subr.mxu0 0.0
    %432 = vmatpush1.xpose.msra.mxu0 0.0
    %433 = vmatprep.subr.mxu0 0.0
    %434 = vmatpush1.xpose.msra.mxu0 0.0
    %435 = vmatprep.subr.mxu0 0.0
    %436 = vmatpush1.xpose.msra.mxu0 0.0
    %437 = vmatprep.subr.mxu0 0.0
    %438 = vmatpush1.xpose.msra.mxu0 0.0
    %439 = vmatprep.mubr.f32.mxu0 0.0
    %440 = vmatmul.mubr.f32.gmra.mrb[0].mxu0 %v280
    %v441 = vpop.f32.mrb[0].mxu0
    %v442 = vadd.f32 0.0, %v441
    %v443 = vpop.f32.mrb[0].mxu0
    %444 = vmatprep.mubr.f32.mxu0 0.0
    %445 = vmatmul.mubr.f32.gmra.mrb[0].mxu0 %v283
    %v446 = vpop.f32.mrb[0].mxu0
    %v447 = vadd.f32 0.0, %v446
    %v448 = vpop.f32.mrb[0].mxu0
    %449 = vmatprep.mubr.f32.mxu0 0.0
    %450 = vmatmul.mubr.f32.gmra.mrb[0].mxu0 %v286
    %v451 = vpop.f32.mrb[0].mxu0
    %v452 = vadd.f32 0.0, %v451
    %v453 = vpop.f32.mrb[0].mxu0
    %454 = vmatprep.mubr.f32.mxu0 0.0
    %455 = vmatmul.mubr.f32.gmra.mrb[0].mxu0 %v289
    %v456 = vpop.f32.mrb[0].mxu0
    %v457 = vadd.f32 0.0, %v456
    %v458 = vpop.f32.mrb[0].mxu0
    %459 = vmatprep.mubr.f32.mxu0 0.0
    %460 = vmatmul.mubr.f32.gmra.mrb[0].mxu0 %v292
    %v461 = vpop.f32.mrb[0].mxu0
    %v462 = vadd.f32 0.0, %v461
    %v463 = vpop.f32.mrb[0].mxu0
    %464 = vmatprep.mubr.f32.mxu0 0.0
    %465 = vmatmul.mubr.f32.gmra.mrb[0].mxu0 %v295
    %v466 = vpop.f32.mrb[0].mxu0
    %v467 = vadd.f32 0.0, %v466
    %v468 = vpop.f32.mrb[0].mxu0
    %469 = vmatprep.mubr.f32.mxu0 0.0
    %470 = vmatmul.mubr.f32.gmra.mrb[0].mxu0 %v298
    %v471 = vpop.f32.mrb[0].mxu0
    %v472 = vadd.f32 0.0, %v471
    %v473 = vpop.f32.mrb[0].mxu0
    %474 = vmatprep.mubr.f32.mxu0 0.0
    %475 = vmatmul.mubr.f32.gmra.mrb[0].mxu0 %v301
    %v476 = vpop.f32.mrb[0].mxu0
    %v477 = vadd.f32 0.0, %v476
    %v478 = vpop.f32.mrb[0].mxu0
    %479 = vmatprep.mubr.f32.mxu0 0.0
    %480 = vmatmul.mubr.f32.gmra.mrb[0].mxu0 %v304
    %v481 = vpop.f32.mrb[0].mxu0
    %v482 = vadd.f32 0.0, %v481
    %v483 = vpop.f32.mrb[0].mxu0
    %484 = vmatprep.mubr.f32.mxu0 0.0
    %485 = vmatmul.mubr.f32.gmra.mrb[0].mxu0 %v307
    %v486 = vpop.f32.mrb[0].mxu0
    %v487 = vadd.f32 0.0, %v486
    %v488 = vpop.f32.mrb[0].mxu0
    %489 = vmatprep.mubr.f32.mxu0 0.0
    %490 = vmatmul.mubr.f32.gmra.mrb[0].mxu0 %v310
    %v491 = vpop.f32.mrb[0].mxu0
    %v492 = vadd.f32 0.0, %v491
    %v493 = vpop.f32.mrb[0].mxu0
    %494 = vmatprep.mubr.f32.mxu0 0.0
    %495 = vmatmul.mubr.f32.gmra.mrb[0].mxu0 %v313
    %v496 = vpop.f32.mrb[0].mxu0
    %v497 = vadd.f32 0.0, %v496
    %v498 = vpop.f32.mrb[0].mxu0
    %499 = vmatprep.mubr.f32.mxu0 0.0
    %500 = vmatmul.mubr.f32.gmra.mrb[0].mxu0 %v316
    %v501 = vpop.f32.mrb[0].mxu0
    %v502 = vadd.f32 0.0, %v501
    %v503 = vpop.f32.mrb[0].mxu0
    %504 = vmatprep.mubr.f32.mxu0 0.0
    %505 = vmatmul.mubr.f32.gmra.mrb[0].mxu0 %v319
    %v506 = vpop.f32.mrb[0].mxu0
    %v507 = vadd.f32 0.0, %v506
    %v508 = vpop.f32.mrb[0].mxu0
    %509 = vmatprep.mubr.f32.mxu0 0.0
    %510 = vmatmul.mubr.f32.gmra.mrb[0].mxu0 %v322
    %v511 = vpop.f32.mrb[0].mxu0
    %v512 = vadd.f32 0.0, %v511
    %v513 = vpop.f32.mrb[0].mxu0
    %514 = vmatprep.mubr.f32.mxu0 0.0
    %515 = vmatmul.mubr.f32.gmra.mrb[0].mxu0 %v325
    %v516 = vpop.f32.mrb[0].mxu0
    %v517 = vadd.f32 0.0, %v516
    %v518 = vpop.f32.mrb[0].mxu0
    %519 = vdwg.mxu0
    %v520 = vlaneseq
    %v521 = vshrl.u32 %v520, 7
    %v522 = vsub.s32 0, %v521
    %v523 = vrot.slane %v276, %v522
    %v524 = vadd.f32 %v96, %v523
    %v525 = vadd.f32 %v99, %v523
    %v526 = vadd.f32 %v102, %v523
    %v527 = vadd.f32 %v105, %v523
    %v528 = vadd.f32 %v108, %v523
    %v529 = vadd.f32 %v111, %v523
    %v530 = vadd.f32 %v114, %v523
    %v531 = vadd.f32 %v117, %v523
    %v532 = vadd.f32 %v120, %v523
    %v533 = vadd.f32 %v123, %v523
    %v534 = vadd.f32 %v126, %v523
    %v535 = vadd.f32 %v129, %v523
    %v536 = vadd.f32 %v132, %v523
    %v537 = vadd.f32 %v135, %v523
    %v538 = vadd.f32 %v138, %v523
    %v539 = vadd.f32 %v141, %v523
    %v540 = vmul.f32 %v442, 2.0
    %v541 = vmul.f32 %v447, 2.0
    %v542 = vmul.f32 %v452, 2.0
    %v543 = vmul.f32 %v457, 2.0
    %v544 = vmul.f32 %v462, 2.0
    %v545 = vmul.f32 %v467, 2.0
    %v546 = vmul.f32 %v472, 2.0
    %v547 = vmul.f32 %v477, 2.0
    %v548 = vmul.f32 %v482, 2.0
    %v549 = vmul.f32 %v487, 2.0
    %v550 = vmul.f32 %v492, 2.0
    %v551 = vmul.f32 %v497, 2.0
    %v552 = vmul.f32 %v502, 2.0
    %v553 = vmul.f32 %v507, 2.0
    %v554 = vmul.f32 %v512, 2.0
    %v555 = vmul.f32 %v517, 2.0
    %v556 = vsub.f32 %v524, %v540
    %v557 = vsub.f32 %v525, %v541
    %v558 = vsub.f32 %v526, %v542
    %v559 = vsub.f32 %v527, %v543
    %v560 = vsub.f32 %v528, %v544
    %v561 = vsub.f32 %v529, %v545
    %v562 = vsub.f32 %v530, %v546
    %v563 = vsub.f32 %v531, %v547
    %v564 = vsub.f32 %v532, %v548
    %v565 = vsub.f32 %v533, %v549
    %v566 = vsub.f32 %v534, %v550
    %v567 = vsub.f32 %v535, %v551
    %v568 = vsub.f32 %v536, %v552
    %v569 = vsub.f32 %v537, %v553
    %v570 = vsub.f32 %v538, %v554
    %v571 = vsub.f32 %v539, %v555
    %v572 = vmax.f32 %v556, 0.0
    %v573 = vmax.f32 %v557, 0.0
    %v574 = vmax.f32 %v558, 0.0
    %v575 = vmax.f32 %v559, 0.0
    %v576 = vmax.f32 %v560, 0.0
    %v577 = vmax.f32 %v561, 0.0
    %v578 = vmax.f32 %v562, 0.0
    %v579 = vmax.f32 %v563, 0.0
    %v580 = vmax.f32 %v564, 0.0
    %v581 = vmax.f32 %v565, 0.0
    %v582 = vmax.f32 %v566, 0.0
    %v583 = vmax.f32 %v567, 0.0
    %v584 = vmax.f32 %v568, 0.0
    %v585 = vmax.f32 %v569, 0.0
    %v586 = vmax.f32 %v570, 0.0
    %v587 = vmax.f32 %v571, 0.0
    %v588 = vmul.f32 %v572, -12.5
    %v589 = vmul.f32 %v573, -12.5
    %v590 = vmul.f32 %v574, -12.5
    %v591 = vmul.f32 %v575, -12.5
    %v592 = vmul.f32 %v576, -12.5
    %v593 = vmul.f32 %v577, -12.5
    %v594 = vmul.f32 %v578, -12.5
    %v595 = vmul.f32 %v579, -12.5
    %v596 = vmul.f32 %v580, -12.5
    %v597 = vmul.f32 %v581, -12.5
    %v598 = vmul.f32 %v582, -12.5
    %v599 = vmul.f32 %v583, -12.5
    %v600 = vmul.f32 %v584, -12.5
    %v601 = vmul.f32 %v585, -12.5
    %v602 = vmul.f32 %v586, -12.5
    %v603 = vmul.f32 %v587, -12.5
    %v604 = vmul.f32 %v588, 1.442695
    %v605 = vpow.pop %v604
    %v606 = vmul.f32 %v589, 1.442695
    %v607 = vpow.pop %v606
    %v608 = vmul.f32 %v590, 1.442695
    %v609 = vpow.pop %v608
    %v610 = vmul.f32 %v591, 1.442695
    %v611 = vpow.pop %v610
    %v612 = vmul.f32 %v592, 1.442695
    %v613 = vpow.pop %v612
    %v614 = vmul.f32 %v593, 1.442695
    %v615 = vpow.pop %v614
    %v616 = vmul.f32 %v594, 1.442695
    %v617 = vpow.pop %v616
    %v618 = vmul.f32 %v595, 1.442695
    %v619 = vpow.pop %v618
    %v620 = vmul.f32 %v596, 1.442695
    %v621 = vpow.pop %v620
    %v622 = vmul.f32 %v597, 1.442695
    %v623 = vpow.pop %v622
    %v624 = vmul.f32 %v598, 1.442695
    %v625 = vpow.pop %v624
    %v626 = vmul.f32 %v599, 1.442695
    %v627 = vpow.pop %v626
    %v628 = vmul.f32 %v600, 1.442695
    %v629 = vpow.pop %v628
    %v630 = vmul.f32 %v601, 1.442695
    %v631 = vpow.pop %v630
    %v632 = vmul.f32 %v602, 1.442695
    %v633 = vpow.pop %v632
    %v634 = vmul.f32 %v603, 1.442695
    %v635 = vpow.pop %v634
    %v636 = vlaneseq
    %v637 = vand.u32 %v636, 127
    %s638 = smul.u32 0, 128
    %v639 = vstv %s638
    %v640 = vadd.s32 %v637, %v639
    %vm641 = vcmp.lt.s32.totalorder %v640, 16
    %v642 = vsel %vm641, 1, 0
    %v643 = vcvt.s32.f32 %v642
    %v644 = vld [vmem:[#allocation2] sm:$0x1]
    %645 = vmatprep.subr.mxu0 0.0
    %646 = vmatpush1.xpose.msra.mxu0 %v605
    %647 = vmatprep.subr.mxu0 0.0
    %648 = vmatpush1.xpose.msra.mxu0 %v607
    %649 = vmatprep.subr.mxu0 0.0
    %650 = vmatpush1.xpose.msra.mxu0 %v609
    %651 = vmatprep.subr.mxu0 0.0
    %652 = vmatpush1.xpose.msra.mxu0 %v611
    %653 = vmatprep.subr.mxu0 0.0
    %654 = vmatpush1.xpose.msra.mxu0 %v613
    %655 = vmatprep.subr.mxu0 0.0
    %656 = vmatpush1.xpose.msra.mxu0 %v615
    %657 = vmatprep.subr.mxu0 0.0
    %658 = vmatpush1.xpose.msra.mxu0 %v617
    %659 = vmatprep.subr.mxu0 0.0
    %660 = vmatpush1.xpose.msra.mxu0 %v619
    %661 = vmatprep.subr.mxu0 0.0
    %662 = vmatpush1.xpose.msra.mxu0 %v621
    %663 = vmatprep.subr.mxu0 0.0
    %664 = vmatpush1.xpose.msra.mxu0 %v623
    %665 = vmatprep.subr.mxu0 0.0
    %666 = vmatpush1.xpose.msra.mxu0 %v625
    %667 = vmatprep.subr.mxu0 0.0
    %668 = vmatpush1.xpose.msra.mxu0 %v627
    %669 = vmatprep.subr.mxu0 0.0
    %670 = vmatpush1.xpose.msra.mxu0 %v629
    %671 = vmatprep.subr.mxu0 0.0
    %672 = vmatpush1.xpose.msra.mxu0 %v631
    %673 = vmatprep.subr.mxu0 0.0
    %674 = vmatpush1.xpose.msra.mxu0 %v633
    %675 = vmatprep.subr.mxu0 0.0
    %676 = vmatpush1.xpose.msra.mxu0 %v635
    %677 = vmatprep.subr.mxu0 0.0
    %678 = vmatpush1.xpose.msra.mxu0 0.0
    %679 = vmatprep.subr.mxu0 0.0
    %680 = vmatpush1.xpose.msra.mxu0 0.0
    %681 = vmatprep.subr.mxu0 0.0
    %682 = vmatpush1.xpose.msra.mxu0 0.0
    %683 = vmatprep.subr.mxu0 0.0
    %684 = vmatpush1.xpose.msra.mxu0 0.0
    %685 = vmatprep.subr.mxu0 0.0
    %686 = vmatpush1.xpose.msra.mxu0 0.0
    %687 = vmatprep.subr.mxu0 0.0
    %688 = vmatpush1.xpose.msra.mxu0 0.0
    %689 = vmatprep.subr.mxu0 0.0
    %690 = vmatpush1.xpose.msra.mxu0 0.0
    %691 = vmatprep.subr.mxu0 0.0
    %692 = vmatpush1.xpose.msra.mxu0 0.0
    %693 = vmatprep.subr.mxu0 0.0
    %694 = vmatpush1.xpose.msra.mxu0 0.0
    %695 = vmatprep.subr.mxu0 0.0
    %696 = vmatpush1.xpose.msra.mxu0 0.0
    %697 = vmatprep.subr.mxu0 0.0
    %698 = vmatpush1.xpose.msra.mxu0 0.0
    %699 = vmatprep.subr.mxu0 0.0
    %700 = vmatpush1.xpose.msra.mxu0 0.0
    %701 = vmatprep.subr.mxu0 0.0
    %702 = vmatpush1.xpose.msra.mxu0 0.0
    %703 = vmatprep.subr.mxu0 0.0
    %704 = vmatpush1.xpose.msra.mxu0 0.0
    %705 = vmatprep.subr.mxu0 0.0
    %706 = vmatpush1.xpose.msra.mxu0 0.0
    %707 = vmatprep.subr.mxu0 0.0
    %708 = vmatpush1.xpose.msra.mxu0 0.0
    %709 = vmatprep.mubr.f32.mxu0 0.0
    %710 = vmatmul.mubr.f32.gmra.mrb[0].mxu0 %v643
    %v711 = vpop.f32.mrb[0].mxu0
    %v712 = vadd.f32 0.0, %v711
    %v713 = vpop.f32.mrb[0].mxu0
    %714 = vdwg.mxu0
    %v715 = vadd.f32 %v644, %v712
    %716 = vst [vmem:[#allocation2] sm:$0x1] %v715
    // Predicated region
    $region22: #{tpu_custom_call.1} parent=1 // pred_check
      %p717 = pneg %p40
    $region23: #{tpu_custom_call.1} parent=1 // pred_check_branch
      %719 = sbr.rel (%p717) target = $region25
    $region24: #{tpu_custom_call.1} parent=1 // pred_region
      %v720 = vld [vmem:[#allocation2] sm:$0x1]
      %v721 = vmul.f32 %v720, 0.12466946
      %722 = vst [vmem:[#allocation8] sm:$0x1] %v721
    $region25: #{tpu_custom_call.1} parent=1 // pred_fallthru
      _
    // Predicated region
    $region26: #{tpu_custom_call.1} parent=1 // pred_check
      _
    $region27: #{tpu_custom_call.1} parent=1 // pred_check_branch
      %724 = sbr.rel (0) target = $region29
    $region28: #{tpu_custom_call.1} parent=1 // pred_region
      %s726 = ssub.s32 16, 16
      %727 = vsyncadd [#allocation5], %s726
      %s729 = sshll.u32 [#allocation8], 4
      %s730 = int_to_ptr.vmem [resolvable:$true] %s729
      %732 = dma.vmem_to_hbm [thread:$0]  %s730, 16, %s2, [#allocation5]
    $region29: #{tpu_custom_call.1} parent=1 // pred_fallthru
      _
    // Predicated region
    $region30: #{tpu_custom_call.1} parent=1 // pred_check
      _
    $region31: #{tpu_custom_call.1} parent=1 // pred_check_branch
      %734 = sbr.rel (0) target = $region33
    $region32: #{tpu_custom_call.1} parent=1 // pred_region
      %735 = dma.done [#allocation5], 16
    $region33: #{tpu_custom_call.1} parent=1 // pred_fallthru
      _
    %736 = vsyncpa [#allocation4], 1
    %737 = vsyncpa [#allocation7], 1
    %738 = vsyncpa [#allocation5], 1

</llo_original>
